<compile_context>
chip_gen: v5e
topology: v5e:2x2
jax: 0.10.0
libtpu: 0.0.40
codegen_flags: <defaults>
</compile_context>

<pallas_src>
import jax
import jax.numpy as jnp
from jax.experimental import pallas as pl
from jax.experimental.pallas import tpu as pltpu

HEAD_N = 8  # fused-head output width (col 0 = ext, col 1 = int, cols 2-7 zero)


def critic_kernel(x_ref, wh_ref, bh_ref, wheads_ref, bheads_ref, out_ref):
    # act0: tanh on the raw input (EUP slot, effectively free next to the DMA)
    y = jnp.tanh(x_ref[...])
    # hidden linear + act1 (tanh)
    h = jnp.tanh(
        jnp.dot(y, wh_ref[...], preferred_element_type=jnp.float32) + bh_ref[...]
    )
    # fused value heads: single (H, 8) matmul, narrow (tile, 8) store.
    out_ref[...] = (
        jnp.dot(h, wheads_ref[...], preferred_element_type=jnp.float32)
        + bheads_ref[...]
    )


def _choose_tb(B):
    """Pick a batch tile: amortize per-step overhead, keep >=~6 grid steps
    when B is large so both v7x TensorCores get an overlapped pipeline."""
    tb = (B // 6) // 256 * 256
    return max(512, min(2048, tb))


def model_critic_forward(x, wh_t, bh, w_heads, b_heads, *, tb=None):
    """Returns (ext_value, int_value), each (B, 1) float32.

    x        : (B, D_in)      f32
    wh_t     : (D_in, H)      f32   (hidden.weight transposed)
    bh       : (1, H)         f32
    w_heads  : (H, HEAD_N)    f32   (col 0 = ext_value.weight, col 1 = int_value.weight)
    b_heads  : (1, HEAD_N)    f32   (col 0 = ext bias, col 1 = int bias)
    """
    B, D_in = x.shape
    H = wh_t.shape[1]
    if tb is None:
        tb = _choose_tb(B)

    if B <= tb:
        # Small batch: no grid at all -> no per-step pipeline machinery.
        out = pl.pallas_call(
            critic_kernel,
            out_shape=jax.ShapeDtypeStruct((B, HEAD_N), jnp.float32),
            in_specs=[pl.BlockSpec(memory_space=pltpu.MemorySpace.VMEM)] * 5,
            out_specs=pl.BlockSpec(memory_space=pltpu.MemorySpace.VMEM),
        )(x, wh_t, bh, w_heads, b_heads)
    else:
        # Large batch: tile over B, keep weights VMEM-resident, megacore-parallel.
        # No wrapper-side pad: ragged last block is clipped by Pallas (overhang
        # rows are read-undefined, output writes for them are discarded).
        n_tiles = pl.cdiv(B, tb)
        out = pl.pallas_call(
            critic_kernel,
            out_shape=jax.ShapeDtypeStruct((B, HEAD_N), jnp.float32),
            grid=(n_tiles,),
            in_specs=[
                pl.BlockSpec((tb, D_in), lambda i: (i, 0)),       # x tile
                pl.BlockSpec((D_in, H), lambda i: (0, 0)),        # hidden weight^T (resident)
                pl.BlockSpec((1, H), lambda i: (0, 0)),           # hidden bias     (resident)
                pl.BlockSpec((H, HEAD_N), lambda i: (0, 0)),      # fused head weight (resident)
                pl.BlockSpec((1, HEAD_N), lambda i: (0, 0)),      # fused head bias   (resident)
            ],
            out_specs=pl.BlockSpec((tb, HEAD_N), lambda i: (i, 0)),
            compiler_params=pltpu.CompilerParams(
                dimension_semantics=("parallel",)
            ),
        )(x, wh_t, bh, w_heads, b_heads)

    # Split the fused output back into the two heads (wrapper-side glue).
    return out[:, 0:1], out[:, 1:2]


def orthogonal_init(key, rows, cols, gain):
    """Deterministic orthogonal init (same spirit as torch.nn.init.orthogonal_)."""
    flat = jax.random.normal(key, (max(rows, cols), min(rows, cols)), dtype=jnp.float32)
    q, r = jnp.linalg.qr(flat)
    q = q * jnp.sign(jnp.diagonal(r))
    if rows < cols:
        q = q.T
    return gain * q[:rows, :cols]


def reference_forward(x, wh, bh, we, be, wi, bi):
    y = jnp.tanh(x)
    h = jnp.tanh(y @ wh.T + bh)
    return h @ we.T + be, h @ wi.T + bi


def pack_params(wh, bh, we, be, wi, bi):
    """Pre-transpose / fuse parameters for the kernel (plain-JAX glue)."""
    H = wh.shape[0]
    wh_t = wh.T                                    # (D_in, H)
    bh_k = bh.reshape(1, H)                        # (1, H)
    w_heads = jnp.zeros((H, HEAD_N), jnp.float32)
    w_heads = w_heads.at[:, 0].set(we.reshape(-1)).at[:, 1].set(wi.reshape(-1))
    b_heads = jnp.zeros((1, HEAD_N), jnp.float32)
    b_heads = b_heads.at[0, 0].set(be[0]).at[0, 1].set(bi[0])
    return wh_t, bh_k, w_heads, b_heads


if __name__ == "__main__":
    # Small shapes consistent with the module: batch=8, inputs_count=32, hidden_count=32
    B, inputs_count, hidden_count = 8, 32, 32

    key = jax.random.PRNGKey(0)
    k_x, k_h, k_e, k_i, k_big = jax.random.split(key, 5)

    x = jax.random.normal(k_x, (B, inputs_count), dtype=jnp.float32)

    # Parameters, deterministic init matching the module's __init__ spec.
    wh = orthogonal_init(k_h, hidden_count, inputs_count, 0.1)   # hidden.weight (H, D_in)
    bh = jnp.zeros((hidden_count,), dtype=jnp.float32)           # hidden.bias
    we = orthogonal_init(k_e, 1, hidden_count, 0.01)             # ext_value.weight (1, H)
    be = jnp.zeros((1,), dtype=jnp.float32)
    wi = orthogonal_init(k_i, 1, hidden_count, 0.01)             # int_value.weight (1, H)
    bi = jnp.zeros((1,), dtype=jnp.float32)

    wh_t, bh_k, w_heads, b_heads = pack_params(wh, bh, we, be, wi, bi)

    # --- small-batch (grid-less) path ---
    ext_v, int_v = model_critic_forward(x, wh_t, bh_k, w_heads, b_heads)
    jax.block_until_ready((ext_v, int_v))

    ext_ref, int_ref = reference_forward(x, wh, bh, we, be, wi, bi)
    assert ext_v.shape == (B, 1) and int_v.shape == (B, 1)
    assert jnp.allclose(ext_v, ext_ref, atol=1e-5, rtol=1e-5)
    assert jnp.allclose(int_v, int_ref, atol=1e-5, rtol=1e-5)

    # --- batch-tiled path, non-divisible B (ragged last block, no pad) ---
    B_big = 1000
    x_big = jax.random.normal(k_big, (B_big, inputs_count), dtype=jnp.float32)
    ext_b, int_b = model_critic_forward(x_big, wh_t, bh_k, w_heads, b_heads, tb=256)
    jax.block_until_ready((ext_b, int_b))

    ext_ref_b, int_ref_b = reference_forward(x_big, wh, bh, we, be, wi, bi)
    assert ext_b.shape == (B_big, 1) and int_b.shape == (B_big, 1)
    assert jnp.allclose(ext_b, ext_ref_b, atol=1e-5, rtol=1e-5)
    assert jnp.allclose(int_b, int_ref_b, atol=1e-5, rtol=1e-5)

    print("KERNEL_OK")
</pallas_src>

<mosaic_0001>
module attributes {stable_mosaic.version = 11 : i64} {
  func.func @critic_kernel(%arg0: memref<8x32xf32, #tpu.memory_space<vmem>>, %arg1: memref<32x32xf32, #tpu.memory_space<vmem>>, %arg2: memref<1x32xf32, #tpu.memory_space<vmem>>, %arg3: memref<32x8xf32, #tpu.memory_space<vmem>>, %arg4: memref<1x8xf32, #tpu.memory_space<vmem>>, %arg5: memref<8x8xf32, #tpu.memory_space<vmem>>) attributes {dimension_semantics = [], scalar_prefetch = 0 : i64, scratch_operands = 0 : i64, tpu.core_type = #tpu.core_type<tc>} {
    %c0 = arith.constant 0 : index
    %c0_0 = arith.constant 0 : index
    %0 = vector.load %arg0[%c0, %c0_0] : memref<8x32xf32, #tpu.memory_space<vmem>>, vector<8x32xf32>
    %1 = math.tanh %0 : vector<8x32xf32>
    %c0_1 = arith.constant 0 : index
    %c0_2 = arith.constant 0 : index
    %2 = vector.load %arg1[%c0_1, %c0_2] : memref<32x32xf32, #tpu.memory_space<vmem>>, vector<32x32xf32>
    %cst = arith.constant dense<0.000000e+00> : vector<8x32xf32>
    %3 = tpu.matmul %1, %2, %cst {dimension_numbers = #tpu.dot_dimension_numbers<[1], [0], [0], [1], [0, 0, 1, 1], [], []>} : vector<8x32xf32>, vector<32x32xf32>, vector<8x32xf32> -> vector<8x32xf32>
    %c0_3 = arith.constant 0 : index
    %c0_4 = arith.constant 0 : index
    %4 = vector.load %arg2[%c0_3, %c0_4] : memref<1x32xf32, #tpu.memory_space<vmem>>, vector<1x32xf32>
    %5 = vector.broadcast %4 : vector<1x32xf32> to vector<8x32xf32>
    %6 = arith.addf %3, %5 : vector<8x32xf32>
    %7 = math.tanh %6 : vector<8x32xf32>
    %c0_5 = arith.constant 0 : index
    %c0_6 = arith.constant 0 : index
    %8 = vector.load %arg3[%c0_5, %c0_6] : memref<32x8xf32, #tpu.memory_space<vmem>>, vector<32x8xf32>
    %cst_7 = arith.constant dense<0.000000e+00> : vector<8x8xf32>
    %9 = tpu.matmul %7, %8, %cst_7 {dimension_numbers = #tpu.dot_dimension_numbers<[1], [0], [0], [1], [0, 0, 1, 1], [], []>} : vector<8x32xf32>, vector<32x8xf32>, vector<8x8xf32> -> vector<8x8xf32>
    %c0_8 = arith.constant 0 : index
    %c0_9 = arith.constant 0 : index
    %10 = vector.load %arg4[%c0_8, %c0_9] : memref<1x8xf32, #tpu.memory_space<vmem>>, vector<1x8xf32>
    %11 = vector.broadcast %10 : vector<1x8xf32> to vector<8x8xf32>
    %12 = arith.addf %9, %11 : vector<8x8xf32>
    %c0_10 = arith.constant 0 : index
    %c0_11 = arith.constant 0 : index
    %13 = vector.load %arg5[%c0_10, %c0_11] : memref<8x8xf32, #tpu.memory_space<vmem>>, vector<8x8xf32>
    tpu.vector_store %arg5[%c0_10, %c0_11], %12 {strides = array<i32>} : memref<8x8xf32, #tpu.memory_space<vmem>>, vector<8x8xf32>,
    return
  }
}

</mosaic_0001>

<llo_original>
// kernel: tpu_custom_call.1
$region0: #{tpu_custom_call.1}
  #allocation0 [shape = 'u32[]', space=smem, size = 0x4, offset = 0x4, fixed_abs, tag = 'smem constant byte address 0x4 - core index']
  #allocation1 [shape = 'u32[72,128]{1,0:T(1,128)}', space=vmem, size = 0x9000, scoped, tag = 'internal scratch']
  %s0 = inlined_call_operand.vmem [shape: f32[8,32], index: 0, kind: input, shape index: {}]
  %s1 = inlined_call_operand.vmem [shape: f32[32,32], index: 1, kind: input, shape index: {}]
  %s2 = inlined_call_operand.vmem [shape: f32[1,32], index: 2, kind: input, shape index: {}]
  %s3 = inlined_call_operand.vmem [shape: f32[32,8], index: 3, kind: input, shape index: {}]
  %s4 = inlined_call_operand.vmem [shape: f32[1,8], index: 4, kind: input, shape index: {}]
  %s5 = inlined_call_operand.hbm [shape: f32[8,8], index: 5, kind: output, shape index: {}]
  %s6 = sld [smem:[#allocation0]]
  $region30: #{tpu_custom_call.1} parent=0
    _
  %s8 = ssub.s32 1, %s6
  %s9 = scalar_select 0, %s8, %s6
  $region1: #{tpu_custom_call.1} parent=0
    #allocation2 [shape = 'u8[4096]{0}', space=vmem, size = 0x1000, scoped, tag = 'output window, operand 0, single buffered']
    #allocation3 [shape = 's32[1]{0}', space=sflag, size = 0x4, scoped, tag = 'scoped memory for tpu_custom_call.1']
    %10 = vsyncpa [#allocation3], 0
    // Predicated region
    $region2: #{tpu_custom_call.1} parent=1 // pred_check
      _
    $region3: #{tpu_custom_call.1} parent=1 // pred_check_branch
      %12 = sbr.rel (0) target = $region5
    $region4: #{tpu_custom_call.1} parent=1 // pred_region
      _
    $region5: #{tpu_custom_call.1} parent=1 // pred_fallthru
      _
    // Predicated region
    $region6: #{tpu_custom_call.1} parent=1 // pred_check
      _
    $region7: #{tpu_custom_call.1} parent=1 // pred_check_branch
      %14 = sbr.rel (0) target = $region9
    $region8: #{tpu_custom_call.1} parent=1 // pred_region
      _
    $region9: #{tpu_custom_call.1} parent=1 // pred_fallthru
      _
    // Predicated region
    $region10: #{tpu_custom_call.1} parent=1 // pred_check
      _
    $region11: #{tpu_custom_call.1} parent=1 // pred_check_branch
      %16 = sbr.rel (0) target = $region13
    $region12: #{tpu_custom_call.1} parent=1 // pred_region
      _
    $region13: #{tpu_custom_call.1} parent=1 // pred_fallthru
      _
    // Predicated region
    $region14: #{tpu_custom_call.1} parent=1 // pred_check
      _
    $region15: #{tpu_custom_call.1} parent=1 // pred_check_branch
      %18 = sbr.rel (0) target = $region17
    $region16: #{tpu_custom_call.1} parent=1 // pred_region
      _
    $region17: #{tpu_custom_call.1} parent=1 // pred_fallthru
      _
    // Predicated region
    $region18: #{tpu_custom_call.1} parent=1 // pred_check
      _
    $region19: #{tpu_custom_call.1} parent=1 // pred_check_branch
      %20 = sbr.rel (0) target = $region21
    $region20: #{tpu_custom_call.1} parent=1 // pred_region
      _
    $region21: #{tpu_custom_call.1} parent=1 // pred_fallthru
      _
    %v21 = vld [vmem:[%s0] sm:$0xff]
    %v22 = vtanh.pop %v21
    %v23 = vld [vmem:[%s1] sm:$0xff]
    %v24 = vld [vmem:[%s1 + $0x8] sm:$0xff]
    %v25 = vld [vmem:[%s1 + $0x10] sm:$0xff]
    %v26 = vld [vmem:[%s1 + $0x18] sm:$0xff]
    %v27 = vld [vmem:[%s2] sm:$0x1]
    %v29 = vperm.slane %v27, 0
    %vm31 = vcmask 261120
    %v33 = vsel %vm31, %v22, 0
    %35 = vmatpush.msra.mxu0 0.0
    %36 = vmatpush.msra.mxu0 0.0
    %37 = vmatpush.msra.mxu0 0.0
    %38 = vmatpush.msra.mxu0 0.0
    %39 = vmatpush.msra.mxu0 0.0
    %40 = vmatpush.msra.mxu0 0.0
    %41 = vmatpush.msra.mxu0 0.0
    %42 = vmatpush.msra.mxu0 0.0
    %43 = vmatpush.msra.mxu0 0.0
    %44 = vmatpush.msra.mxu0 0.0
    %45 = vmatpush.msra.mxu0 0.0
    %46 = vmatpush.msra.mxu0 0.0
    %47 = vmatpush.msra.mxu0 %v26
    %48 = vmatpush.msra.mxu0 %v25
    %49 = vmatpush.msra.mxu0 %v24
    %50 = vmatpush.msra.mxu0 %v23
    %51 = vmatmul.f32.gmra.mxu0 %v33
    %v52 = vpop.f32.mrf.mxu0
    %v53 = vadd.f32 %v29, %v52
    %54 = vdwg.mxu0
    %v55 = vtanh.pop %v53
    %v56 = vld [vmem:[%s3] sm:$0xff]
    %v57 = vld [vmem:[%s3 + $0x8] sm:$0xff]
    %v58 = vld [vmem:[%s3 + $0x10] sm:$0xff]
    %v59 = vld [vmem:[%s3 + $0x18] sm:$0xff]
    %v60 = vld [vmem:[%s4] sm:$0x1]
    %v62 = vperm.slane %v60, 0
    %v65 = vsel %vm31, %v55, 0
    %67 = vmatpush.msra.mxu0 0.0
    %68 = vmatpush.msra.mxu0 0.0
    %69 = vmatpush.msra.mxu0 0.0
    %70 = vmatpush.msra.mxu0 0.0
    %71 = vmatpush.msra.mxu0 0.0
    %72 = vmatpush.msra.mxu0 0.0
    %73 = vmatpush.msra.mxu0 0.0
    %74 = vmatpush.msra.mxu0 0.0
    %75 = vmatpush.msra.mxu0 0.0
    %76 = vmatpush.msra.mxu0 0.0
    %77 = vmatpush.msra.mxu0 0.0
    %78 = vmatpush.msra.mxu0 0.0
    %79 = vmatpush.msra.mxu0 %v59
    %80 = vmatpush.msra.mxu0 %v58
    %81 = vmatpush.msra.mxu0 %v57
    %82 = vmatpush.msra.mxu0 %v56
    %83 = vmatmul.f32.gmra.mxu0 %v65
    %v84 = vpop.f32.mrf.mxu0
    %v85 = vadd.f32 %v62, %v84
    %86 = vdwg.mxu0
    %vm87 = vcmask 64512
    %88 = vst.msk [vmem:[#allocation2] sm:$0xff] %vm87, %v85
    // Predicated region
    $region22: #{tpu_custom_call.1} parent=1 // pred_check
      _
    $region23: #{tpu_custom_call.1} parent=1 // pred_check_branch
      %90 = sbr.rel (0) target = $region25
    $region24: #{tpu_custom_call.1} parent=1 // pred_region
      %92 = vsyncadd [#allocation3], 0
      %s94 = sshll.u32 [#allocation2], 4
      %s95 = int_to_ptr.vmem [resolvable:$true] %s94
      %s96 = sshll.u32 %s5, 4
      %s97 = int_to_ptr.hbm [resolvable:$true] %s96
      %99 = dma.vmem_to_hbm [thread:$0]  %s95, 128, %s97, [#allocation3]
    $region25: #{tpu_custom_call.1} parent=1 // pred_fallthru
      _
    // Predicated region
    $region26: #{tpu_custom_call.1} parent=1 // pred_check
      _
    $region27: #{tpu_custom_call.1} parent=1 // pred_check_branch
      %101 = sbr.rel (0) target = $region29
    $region28: #{tpu_custom_call.1} parent=1 // pred_region
      %103 = dma.done [#allocation3], 128
    $region29: #{tpu_custom_call.1} parent=1 // pred_fallthru
      _
    %104 = vsyncpa [#allocation3], 1

</llo_original>
